<compile_context>
chip_gen: v7x
topology: tpu7x:2x2x1
jax: 0.10.0
libtpu: 0.0.40
codegen_flags: <defaults>
</compile_context>

<pallas_src>
import functools

import jax
import jax.numpy as jnp
from jax import lax
from jax.experimental import pallas as pl
from jax.experimental.pallas import tpu as pltpu


# ---------------------------------------------------------------------------
# clDice soft skeleton, written against four shift helpers
#   sh = (shift_row_down, shift_row_up, shift_col_right, shift_col_left)
# each taking (plane, fill) -> plane (vacated border filled with `fill`).
# Shared by the Pallas kernel and the pure-JAX reference.
# ---------------------------------------------------------------------------
def _soft_erode(img, sh):
    inf = jnp.float32(jnp.inf)
    e_h = jnp.minimum(jnp.minimum(sh[0](img, inf), img), sh[1](img, inf))
    e_w = jnp.minimum(jnp.minimum(sh[2](img, inf), img), sh[3](img, inf))
    return jnp.minimum(e_h, e_w)


def _soft_dilate(img, sh):
    ninf = jnp.float32(-jnp.inf)
    d = jnp.maximum(jnp.maximum(sh[0](img, ninf), img), sh[1](img, ninf))
    return jnp.maximum(jnp.maximum(sh[2](d, ninf), d), sh[3](d, ninf))


def _soft_skel(img, num_iter, sh):
    # Restructured: the erode inside soft_open(img) is explicitly reused as the
    # next iteration's img (identical math, num_iter fewer full erodes).
    er = _soft_erode(img, sh)
    img1 = _soft_dilate(er, sh)                 # soft_open(img)
    skel = jnp.maximum(img - img1, 0.0)
    for _ in range(num_iter):
        img = er                                # == soft_erode(previous img)
        er = _soft_erode(img, sh)
        img1 = _soft_dilate(er, sh)             # soft_open(img)
        delta = jnp.maximum(img - img1, 0.0)
        skel = skel + jnp.maximum(delta - skel * delta, 0.0)
    return skel


# ---------------------------------------------------------------------------
# Shift helpers for a stack of P independent planes, each stored as R sublanes
# x L lanes with image rows of length W packed contiguously (L % W == 0).
# L == W is the natural layout; L == 128 with W < 128 is the lane-dense flat
# layout. All boundary masks are built ONCE and closed over.
# ---------------------------------------------------------------------------
def _make_stack_shifts(P, R, L, W):
    S = P * R
    lane = lax.broadcasted_iota(jnp.int32, (S, L), 1)
    sub = lax.broadcasted_iota(jnp.int32, (S, L), 0)

    # "first / last sublane of its sub-plane" masks (no vector modulo needed).
    first = sub == 0
    last = sub == (R - 1)
    for p in range(1, P):
        first = jnp.logical_or(first, sub == p * R)
        last = jnp.logical_or(last, sub == (p * R + R - 1))
    not_first = jnp.logical_not(first)
    not_last = jnp.logical_not(last)

    if L == W:
        m_w_pos = lane >= 1
        m_w_neg = lane < (W - 1)
        m_h_pos = not_first
        m_h_neg = not_last

        def sh_w_pos(x, fill):                   # y[h, w] = x[h, w-1]
            return jnp.where(m_w_pos, pltpu.roll(x, shift=1, axis=1), fill)

        def sh_w_neg(x, fill):                   # y[h, w] = x[h, w+1]
            return jnp.where(m_w_neg, pltpu.roll(x, shift=L - 1, axis=1), fill)

        def sh_h_pos(x, fill):                   # y[h, w] = x[h-1, w]
            return jnp.where(m_h_pos, pltpu.roll(x, shift=1, axis=0), fill)

        def sh_h_neg(x, fill):                   # y[h, w] = x[h+1, w]
            return jnp.where(m_h_neg, pltpu.roll(x, shift=S - 1, axis=0), fill)
    else:
        col = jnp.bitwise_and(lane, W - 1)       # W is a power of two here
        m_w_pos = col >= 1
        m_w_neg = col < (W - 1)
        lane_lt_w = lane < W
        lane_hi = lane >= (L - W)
        m_h_pos = jnp.logical_or(not_first, lane >= W)
        m_h_neg = jnp.logical_or(not_last, lane < (L - W))

        def sh_w_pos(x, fill):
            return jnp.where(m_w_pos, pltpu.roll(x, shift=1, axis=1), fill)

        def sh_w_neg(x, fill):
            return jnp.where(m_w_neg, pltpu.roll(x, shift=L - 1, axis=1), fill)

        # One image-row shift == flat shift by W: lane roll by W plus a sublane
        # roll to carry values across flat-row boundaries.
        def sh_h_pos(x, fill):
            rl = pltpu.roll(x, shift=W, axis=1)
            rs = pltpu.roll(rl, shift=1, axis=0)
            return jnp.where(m_h_pos, jnp.where(lane_lt_w, rs, rl), fill)

        def sh_h_neg(x, fill):
            rl = pltpu.roll(x, shift=L - W, axis=1)
            rs = pltpu.roll(rl, shift=S - 1, axis=0)
            return jnp.where(m_h_neg, jnp.where(lane_hi, rs, rl), fill)

    return (sh_h_pos, sh_h_neg, sh_w_pos, sh_w_neg)


# ---------------------------------------------------------------------------
# Pallas kernel: Bt batch elements per grid step; skeletons of all 2*Bt planes
# computed on a single stacked plane.
# ---------------------------------------------------------------------------
def _ce_clce_kernel(pred_ref, lab_ref, out_ref, stack_ref, ce2_ref, *, num_iter, row_w):
    # pred_ref: (Bt, C, R, L) logits, lab_ref: (Bt, 1, R, L) int32
    # out_ref : (1, 8, 128) f32 -> [sum_ce @ lane 0, sum_tprec+sum_tsens elsewhere]
    # stack_ref / ce2_ref: (2*Bt*R, L) f32 VMEM scratch
    bt, C = pred_ref.shape[0], pred_ref.shape[1]
    R, L = pred_ref.shape[2], pred_ref.shape[3]
    sh = _make_stack_shifts(2 * bt, R, L, row_w)

    sum_ce = jnp.zeros((), jnp.float32)
    for b in range(bt):
        lab = lab_ref[b, 0]                                  # (R, L) int32

        # channel-wise max (logits re-read from the VMEM ref per pass)
        m = pred_ref[b, 0].astype(jnp.float32)
        for c in range(1, C):
            m = jnp.maximum(m, pred_ref[b, c].astype(jnp.float32))

        # sum of exp + true-class logit gather
        x0 = pred_ref[b, 0].astype(jnp.float32)
        s = jnp.exp(x0 - m)
        g = jnp.where(lab == 0, x0, 0.0)
        x1 = pred_ref[b, 1].astype(jnp.float32)
        s = s + jnp.exp(x1 - m)
        g = g + jnp.where(lab == 1, x1, 0.0)
        for c in range(2, C):
            xc = pred_ref[b, c].astype(jnp.float32)
            s = s + jnp.exp(xc - m)
            g = g + jnp.where(lab == c, xc, 0.0)

        logs = jnp.log(s)
        ce = (m - g) + logs                                   # per-pixel CE (stable)
        p1 = jnp.exp((x1 - m) - logs)                         # softmax(y_pred)[:, 1]
        t1 = (lab == 1).astype(jnp.float32)                   # one_hot(y_true)[:, 1]

        sum_ce = sum_ce + jnp.sum(ce)
        # stack layout: rows [0, Bt*R) = one-hot planes, rows [Bt*R, 2*Bt*R) = softmax planes
        stack_ref[pl.ds(b * R, R), :] = t1
        stack_ref[pl.ds((bt + b) * R, R), :] = p1
        # CE duplicated to match the stack so one multiply+reduce gives tprec+tsens
        ce2_ref[pl.ds(b * R, R), :] = ce
        ce2_ref[pl.ds((bt + b) * R, R), :] = ce

    skel = _soft_skel(stack_ref[...], num_iter, sh)
    sum_cl = jnp.sum(ce2_ref[...] * skel)                     # = sum_tprec + sum_tsens

    lane = lax.broadcasted_iota(jnp.int32, (8, 128), 1)
    out_ref[0] = jnp.where(lane == 0, sum_ce, sum_cl)


def ce_clce_loss_pallas(y_pred, y_true, *, num_iter=3, weight_ce=1.0, weight_clce=1.0):
    B, C, H, W = y_pred.shape
    assert C >= 2, "clCE needs at least 2 channels (channel 1 is skeletonized)"

    # Keep bf16/f16 logits as-is (cast inside the kernel) to halve HBM traffic.
    if y_pred.dtype == jnp.float32 or y_pred.dtype == jnp.bfloat16 or y_pred.dtype == jnp.float16:
        pred = y_pred
    else:
        pred = y_pred.astype(jnp.float32)
    lab = y_true.astype(jnp.int32)

    # Lane-dense plane layout when image rows tile the 128-lane vreg exactly.
    if W < 128 and 128 % W == 0 and (H * W) % 128 == 0:
        R, L = (H * W) // 128, 128
    else:
        R, L = H, W
    pred = pred.reshape(B, C, R, L)
    lab = lab.reshape(B, 1, R, L)

    # Generation-aware VMEM budget; ALWAYS pass an explicit limit (v5e default
    # scoped VMEM is 16 MiB, v7x physical VMEM is only 64 MiB per core).
    try:
        vmem_cap = int(pltpu.get_tpu_info().vmem_capacity_bytes)
    except Exception:
        vmem_cap = 128 << 20
    budget = int(vmem_cap * 0.70)

    plane_bytes = R * L * 4
    in_plane_bytes = R * L * pred.dtype.itemsize

    def _vmem_est(bt):
        stack_b = 2 * bt * plane_bytes
        io = 2 * bt * (C * in_plane_bytes + plane_bytes) + 2 * 8 * 128 * 4
        scratch = 2 * stack_b
        work = 18 * stack_b + 8 * plane_bytes                  # skeleton temps + masks + CE temps
        return io + scratch + work + (1 << 20)

    # Batch fusing: block Bt batch elements per grid step so the skeleton stack
    # fills at least one full 8-sublane vreg (only kicks in for small planes).
    sub_per_b = 2 * R
    target_bt = min(B, max(1, -(-8 // sub_per_b)))
    Bt = 1
    for d in range(1, target_bt + 1):
        if B % d == 0 and _vmem_est(d) <= budget:
            Bt = d
    nblk = B // Bt

    vmem_limit = int(min(budget, max(2 * _vmem_est(Bt), 32 << 20)))

    kernel = functools.partial(_ce_clce_kernel, num_iter=int(num_iter), row_w=int(W))

    partials = pl.pallas_call(
        kernel,
        out_shape=jax.ShapeDtypeStruct((nblk, 8, 128), jnp.float32),
        grid=(nblk,),
        in_specs=[
            pl.BlockSpec((Bt, C, R, L), lambda b: (b, 0, 0, 0)),
            pl.BlockSpec((Bt, 1, R, L), lambda b: (b, 0, 0, 0)),
        ],
        out_specs=pl.BlockSpec((1, 8, 128), lambda b: (b, 0, 0)),
        scratch_shapes=[
            pltpu.VMEM((2 * Bt * R, L), jnp.float32),          # skeleton stack
            pltpu.VMEM((2 * Bt * R, L), jnp.float32),          # duplicated CE stack
        ],
        compiler_params=pltpu.CompilerParams(
            dimension_semantics=("parallel",),
            vmem_limit_bytes=vmem_limit,
        ),
    )(pred, lab)

    n_px = jnp.float32(B * H * W)
    ce_loss = jnp.sum(partials[:, 0, 0]) / n_px
    cl_ce = jnp.sum(partials[:, 0, 1]) / n_px                  # tprec + tsens
    return weight_ce * ce_loss + weight_clce * cl_ce


# ---------------------------------------------------------------------------
# Pure-JAX reference (mirrors the PyTorch module) for the correctness check.
# ---------------------------------------------------------------------------
def _host_shifts():
    def mk(axis, s):
        def f(x, fill):
            n = x.shape[axis]
            rolled = jnp.roll(x, s, axis=axis)
            idx = lax.broadcasted_iota(jnp.int32, x.shape, axis)
            mask = (idx >= s) if s >= 0 else (idx < n + s)
            return jnp.where(mask, rolled, fill)
        return f
    return (mk(0, 1), mk(0, -1), mk(1, 1), mk(1, -1))


def ce_clce_loss_reference(y_pred, y_true, *, num_iter=3, weight_ce=1.0, weight_clce=1.0):
    B, C, H, W = y_pred.shape
    labels = y_true[:, 0].astype(jnp.int32)
    logp = jax.nn.log_softmax(y_pred.astype(jnp.float32), axis=1)
    oh = jax.nn.one_hot(labels, C, axis=1, dtype=jnp.float32)       # scatter_ one-hot
    cross_ent = -jnp.sum(oh * logp, axis=1)                         # (B, H, W)
    ce_loss = cross_ent.mean()
    p1 = jnp.exp(logp[:, 1])
    t1 = oh[:, 1]
    sh = _host_shifts()
    skel_p = jnp.stack([_soft_skel(p1[b], num_iter, sh) for b in range(B)])
    skel_t = jnp.stack([_soft_skel(t1[b], num_iter, sh) for b in range(B)])
    tprec = (cross_ent * skel_t).mean()
    tsens = (cross_ent * skel_p).mean()
    return weight_ce * ce_loss + weight_clce * (tprec + tsens)


if __name__ == "__main__":
    # ce_kwargs = {} (default RobustCrossEntropyLoss), iter_=3, weight_ce=1, weight_clCE=1
    B, C, H, W = 2, 4, 16, 16
    key = jax.random.PRNGKey(0)
    kp, kt = jax.random.split(key)
    y_pred = jax.random.normal(kp, (B, C, H, W), dtype=jnp.float32)
    y_true = jax.random.randint(kt, (B, 1, H, W), 0, C, dtype=jnp.int32)

    loss = ce_clce_loss_pallas(y_pred, y_true, num_iter=3, weight_ce=1.0, weight_clce=1.0)
    loss = jax.block_until_ready(loss)

    ref = jax.block_until_ready(
        ce_clce_loss_reference(y_pred, y_true, num_iter=3, weight_ce=1.0, weight_clce=1.0)
    )
    assert bool(jnp.isfinite(loss)), "non-finite loss from kernel"
    assert abs(float(loss) - float(ref)) < 1e-4 * max(1.0, abs(float(ref))), (
        f"mismatch: pallas={float(loss)} ref={float(ref)}"
    )
    print("KERNEL_OK")
</pallas_src>

<mosaic_0001>
module attributes {stable_mosaic.version = 11 : i64} {
  func.func @_ce_clce_kernel(%arg0: i32, %arg1: memref<2x4x2x128xf32, #tpu.memory_space<vmem>>, %arg2: memref<2x1x2x128xi32, #tpu.memory_space<vmem>>, %arg3: memref<1x8x128xf32, #tpu.memory_space<vmem>>, %arg4: memref<8x128xf32, #tpu.memory_space<vmem>>, %arg5: memref<8x128xf32, #tpu.memory_space<vmem>>) attributes {dimension_semantics = [#tpu.dimension_semantics<parallel>], iteration_bounds = array<i64: 1>, scalar_prefetch = 0 : i64, scratch_operands = 2 : i64, tpu.core_type = #tpu.core_type<tc>, window_params = [{transform_indices = @transform_0, window_bounds = array<i64: 2, 4, 2, 128>}, {transform_indices = @transform_1, window_bounds = array<i64: 2, 1, 2, 128>}, {transform_indices = @transform_2, window_bounds = array<i64: 1, 8, 128>}]} {
    %0 = tpu.iota {dimensions = array<i32: 1>} : vector<8x128xi32>
    %1 = tpu.iota {dimensions = array<i32: 0>} : vector<8x128xi32>
    %c0_i32 = arith.constant 0 : i32
    %2 = vector.broadcast %c0_i32 : i32 to vector<8x128xi32>
    %3 = arith.cmpi eq, %1, %2 : vector<8x128xi32>
    %c1_i32 = arith.constant 1 : i32
    %4 = vector.broadcast %c1_i32 : i32 to vector<8x128xi32>
    %5 = arith.cmpi eq, %1, %4 : vector<8x128xi32>
    %c2_i32 = arith.constant 2 : i32
    %6 = vector.broadcast %c2_i32 : i32 to vector<8x128xi32>
    %7 = arith.cmpi eq, %1, %6 : vector<8x128xi32>
    %8 = arith.ori %3, %7 : vector<8x128xi1>
    %c3_i32 = arith.constant 3 : i32
    %9 = vector.broadcast %c3_i32 : i32 to vector<8x128xi32>
    %10 = arith.cmpi eq, %1, %9 : vector<8x128xi32>
    %11 = arith.ori %5, %10 : vector<8x128xi1>
    %c4_i32 = arith.constant 4 : i32
    %12 = vector.broadcast %c4_i32 : i32 to vector<8x128xi32>
    %13 = arith.cmpi eq, %1, %12 : vector<8x128xi32>
    %14 = arith.ori %8, %13 : vector<8x128xi1>
    %c5_i32 = arith.constant 5 : i32
    %15 = vector.broadcast %c5_i32 : i32 to vector<8x128xi32>
    %16 = arith.cmpi eq, %1, %15 : vector<8x128xi32>
    %17 = arith.ori %11, %16 : vector<8x128xi1>
    %c6_i32 = arith.constant 6 : i32
    %18 = vector.broadcast %c6_i32 : i32 to vector<8x128xi32>
    %19 = arith.cmpi eq, %1, %18 : vector<8x128xi32>
    %20 = arith.ori %14, %19 : vector<8x128xi1>
    %c7_i32 = arith.constant 7 : i32
    %21 = vector.broadcast %c7_i32 : i32 to vector<8x128xi32>
    %22 = arith.cmpi eq, %1, %21 : vector<8x128xi32>
    %23 = arith.ori %17, %22 : vector<8x128xi1>
    %cst = arith.constant dense<true> : vector<8x128xi1>
    %24 = arith.xori %20, %cst : vector<8x128xi1>
    %cst_0 = arith.constant dense<true> : vector<8x128xi1>
    %25 = arith.xori %23, %cst_0 : vector<8x128xi1>
    %c15_i32 = arith.constant 15 : i32
    %26 = vector.broadcast %c15_i32 : i32 to vector<8x128xi32>
    %27 = arith.andi %0, %26 : vector<8x128xi32>
    %c1_i32_1 = arith.constant 1 : i32
    %28 = vector.broadcast %c1_i32_1 : i32 to vector<8x128xi32>
    %29 = arith.cmpi sge, %27, %28 : vector<8x128xi32>
    %c15_i32_2 = arith.constant 15 : i32
    %30 = vector.broadcast %c15_i32_2 : i32 to vector<8x128xi32>
    %31 = arith.cmpi slt, %27, %30 : vector<8x128xi32>
    %c16_i32 = arith.constant 16 : i32
    %32 = vector.broadcast %c16_i32 : i32 to vector<8x128xi32>
    %33 = arith.cmpi slt, %0, %32 : vector<8x128xi32>
    %c112_i32 = arith.constant 112 : i32
    %34 = vector.broadcast %c112_i32 : i32 to vector<8x128xi32>
    %35 = arith.cmpi sge, %0, %34 : vector<8x128xi32>
    %c16_i32_3 = arith.constant 16 : i32
    %36 = vector.broadcast %c16_i32_3 : i32 to vector<8x128xi32>
    %37 = arith.cmpi sge, %0, %36 : vector<8x128xi32>
    %38 = arith.ori %24, %37 : vector<8x128xi1>
    %c112_i32_4 = arith.constant 112 : i32
    %39 = vector.broadcast %c112_i32_4 : i32 to vector<8x128xi32>
    %40 = arith.cmpi slt, %0, %39 : vector<8x128xi32>
    %41 = arith.ori %25, %40 : vector<8x128xi1>
    %c0 = arith.constant 0 : index
    %c0_5 = arith.constant 0 : index
    %c0_6 = arith.constant 0 : index
    %c0_7 = arith.constant 0 : index
    %42 = vector.load %arg2[%c0, %c0_5, %c0_6, %c0_7] : memref<2x1x2x128xi32, #tpu.memory_space<vmem>>, vector<1x1x2x128xi32>
    %43 = vector.shape_cast %42 : vector<1x1x2x128xi32> to vector<2x128xi32>
    %c0_8 = arith.constant 0 : index
    %c0_9 = arith.constant 0 : index
    %c0_10 = arith.constant 0 : index
    %c0_11 = arith.constant 0 : index
    %44 = vector.load %arg1[%c0_8, %c0_9, %c0_10, %c0_11] : memref<2x4x2x128xf32, #tpu.memory_space<vmem>>, vector<1x1x2x128xf32>
    %45 = vector.shape_cast %44 : vector<1x1x2x128xf32> to vector<2x128xf32>
    %c0_12 = arith.constant 0 : index
    %c1 = arith.constant 1 : index
    %c0_13 = arith.constant 0 : index
    %c0_14 = arith.constant 0 : index
    %46 = vector.load %arg1[%c0_12, %c1, %c0_13, %c0_14] : memref<2x4x2x128xf32, #tpu.memory_space<vmem>>, vector<1x1x2x128xf32>
    %47 = vector.shape_cast %46 : vector<1x1x2x128xf32> to vector<2x128xf32>
    %48 = arith.maximumf %45, %47 : vector<2x128xf32>
    %c0_15 = arith.constant 0 : index
    %c2 = arith.constant 2 : index
    %c0_16 = arith.constant 0 : index
    %c0_17 = arith.constant 0 : index
    %49 = vector.load %arg1[%c0_15, %c2, %c0_16, %c0_17] : memref<2x4x2x128xf32, #tpu.memory_space<vmem>>, vector<1x1x2x128xf32>
    %50 = vector.shape_cast %49 : vector<1x1x2x128xf32> to vector<2x128xf32>
    %51 = arith.maximumf %48, %50 : vector<2x128xf32>
    %c0_18 = arith.constant 0 : index
    %c3 = arith.constant 3 : index
    %c0_19 = arith.constant 0 : index
    %c0_20 = arith.constant 0 : index
    %52 = vector.load %arg1[%c0_18, %c3, %c0_19, %c0_20] : memref<2x4x2x128xf32, #tpu.memory_space<vmem>>, vector<1x1x2x128xf32>
    %53 = vector.shape_cast %52 : vector<1x1x2x128xf32> to vector<2x128xf32>
    %54 = arith.maximumf %51, %53 : vector<2x128xf32>
    %c0_21 = arith.constant 0 : index
    %c0_22 = arith.constant 0 : index
    %c0_23 = arith.constant 0 : index
    %c0_24 = arith.constant 0 : index
    %55 = vector.load %arg1[%c0_21, %c0_22, %c0_23, %c0_24] : memref<2x4x2x128xf32, #tpu.memory_space<vmem>>, vector<1x1x2x128xf32>
    %56 = vector.shape_cast %55 : vector<1x1x2x128xf32> to vector<2x128xf32>
    %57 = arith.subf %56, %54 : vector<2x128xf32>
    %58 = math.exp %57 : vector<2x128xf32>
    %c0_i32_25 = arith.constant 0 : i32
    %59 = vector.broadcast %c0_i32_25 : i32 to vector<2x128xi32>
    %60 = arith.cmpi eq, %43, %59 : vector<2x128xi32>
    %cst_26 = arith.constant 0.000000e+00 : f32
    %61 = vector.broadcast %cst_26 : f32 to vector<2x128xf32>
    %62 = arith.select %60, %56, %61 : vector<2x128xi1>, vector<2x128xf32>
    %c0_27 = arith.constant 0 : index
    %c1_28 = arith.constant 1 : index
    %c0_29 = arith.constant 0 : index
    %c0_30 = arith.constant 0 : index
    %63 = vector.load %arg1[%c0_27, %c1_28, %c0_29, %c0_30] : memref<2x4x2x128xf32, #tpu.memory_space<vmem>>, vector<1x1x2x128xf32>
    %64 = vector.shape_cast %63 : vector<1x1x2x128xf32> to vector<2x128xf32>
    %65 = arith.subf %64, %54 : vector<2x128xf32>
    %66 = math.exp %65 : vector<2x128xf32>
    %67 = arith.addf %58, %66 : vector<2x128xf32>
    %c1_i32_31 = arith.constant 1 : i32
    %68 = vector.broadcast %c1_i32_31 : i32 to vector<2x128xi32>
    %69 = arith.cmpi eq, %43, %68 : vector<2x128xi32>
    %cst_32 = arith.constant 0.000000e+00 : f32
    %70 = vector.broadcast %cst_32 : f32 to vector<2x128xf32>
    %71 = arith.select %69, %64, %70 : vector<2x128xi1>, vector<2x128xf32>
    %72 = arith.addf %62, %71 : vector<2x128xf32>
    %c0_33 = arith.constant 0 : index
    %c2_34 = arith.constant 2 : index
    %c0_35 = arith.constant 0 : index
    %c0_36 = arith.constant 0 : index
    %73 = vector.load %arg1[%c0_33, %c2_34, %c0_35, %c0_36] : memref<2x4x2x128xf32, #tpu.memory_space<vmem>>, vector<1x1x2x128xf32>
    %74 = vector.shape_cast %73 : vector<1x1x2x128xf32> to vector<2x128xf32>
    %75 = arith.subf %74, %54 : vector<2x128xf32>
    %76 = math.exp %75 : vector<2x128xf32>
    %77 = arith.addf %67, %76 : vector<2x128xf32>
    %c2_i32_37 = arith.constant 2 : i32
    %78 = vector.broadcast %c2_i32_37 : i32 to vector<2x128xi32>
    %79 = arith.cmpi eq, %43, %78 : vector<2x128xi32>
    %cst_38 = arith.constant 0.000000e+00 : f32
    %80 = vector.broadcast %cst_38 : f32 to vector<2x128xf32>
    %81 = arith.select %79, %74, %80 : vector<2x128xi1>, vector<2x128xf32>
    %82 = arith.addf %72, %81 : vector<2x128xf32>
    %c0_39 = arith.constant 0 : index
    %c3_40 = arith.constant 3 : index
    %c0_41 = arith.constant 0 : index
    %c0_42 = arith.constant 0 : index
    %83 = vector.load %arg1[%c0_39, %c3_40, %c0_41, %c0_42] : memref<2x4x2x128xf32, #tpu.memory_space<vmem>>, vector<1x1x2x128xf32>
    %84 = vector.shape_cast %83 : vector<1x1x2x128xf32> to vector<2x128xf32>
    %85 = arith.subf %84, %54 : vector<2x128xf32>
    %86 = math.exp %85 : vector<2x128xf32>
    %87 = arith.addf %77, %86 : vector<2x128xf32>
    %c3_i32_43 = arith.constant 3 : i32
    %88 = vector.broadcast %c3_i32_43 : i32 to vector<2x128xi32>
    %89 = arith.cmpi eq, %43, %88 : vector<2x128xi32>
    %cst_44 = arith.constant 0.000000e+00 : f32
    %90 = vector.broadcast %cst_44 : f32 to vector<2x128xf32>
    %91 = arith.select %89, %84, %90 : vector<2x128xi1>, vector<2x128xf32>
    %92 = arith.addf %82, %91 : vector<2x128xf32>
    %93 = math.log %87 : vector<2x128xf32>
    %94 = arith.subf %54, %92 : vector<2x128xf32>
    %95 = arith.addf %94, %93 : vector<2x128xf32>
    %96 = arith.subf %64, %54 : vector<2x128xf32>
    %97 = arith.subf %96, %93 : vector<2x128xf32>
    %98 = math.exp %97 : vector<2x128xf32>
    %c1_i32_45 = arith.constant 1 : i32
    %99 = vector.broadcast %c1_i32_45 : i32 to vector<2x128xi32>
    %100 = arith.cmpi eq, %43, %99 : vector<2x128xi32>
    %101 = arith.extui %100 : vector<2x128xi1> to vector<2x128xi32>
    %102 = arith.sitofp %101 : vector<2x128xi32> to vector<2x128xf32>
    %103 = vector.shape_cast %95 : vector<2x128xf32> to vector<1x2x128xf32>
    %cst_46 = arith.constant dense<0.000000e+00> : vector<1xf32>
    %104 = vector.multi_reduction <add>, %103, %cst_46 [1, 2] : vector<1x2x128xf32> to vector<1xf32>
    %105 = vector.shape_cast %104 : vector<1xf32> to vector<1x1x1xf32>
    %106 = vector.extract %105[0, 0, 0] : f32 from vector<1x1x1xf32>
    %cst_47 = arith.constant 0.000000e+00 : f32
    %107 = arith.addf %cst_47, %106 : f32
    %c0_48 = arith.constant 0 : index
    %c0_49 = arith.constant 0 : index
    %108 = vector.load %arg4[%c0_48, %c0_49] : memref<8x128xf32, #tpu.memory_space<vmem>>, vector<2x128xf32>
    tpu.vector_store %arg4[%c0_48, %c0_49], %102 {strides = array<i32>} : memref<8x128xf32, #tpu.memory_space<vmem>>, vector<2x128xf32>,
    %c4 = arith.constant 4 : index
    %c0_50 = arith.constant 0 : index
    %109 = vector.load %arg4[%c4, %c0_50] : memref<8x128xf32, #tpu.memory_space<vmem>>, vector<2x128xf32>
    tpu.vector_store %arg4[%c4, %c0_50], %98 {strides = array<i32>} : memref<8x128xf32, #tpu.memory_space<vmem>>, vector<2x128xf32>,
    %c0_51 = arith.constant 0 : index
    %c0_52 = arith.constant 0 : index
    %110 = vector.load %arg5[%c0_51, %c0_52] : memref<8x128xf32, #tpu.memory_space<vmem>>, vector<2x128xf32>
    tpu.vector_store %arg5[%c0_51, %c0_52], %95 {strides = array<i32>} : memref<8x128xf32, #tpu.memory_space<vmem>>, vector<2x128xf32>,
    %c4_53 = arith.constant 4 : index
    %c0_54 = arith.constant 0 : index
    %111 = vector.load %arg5[%c4_53, %c0_54] : memref<8x128xf32, #tpu.memory_space<vmem>>, vector<2x128xf32>
    tpu.vector_store %arg5[%c4_53, %c0_54], %95 {strides = array<i32>} : memref<8x128xf32, #tpu.memory_space<vmem>>, vector<2x128xf32>,
    %c1_55 = arith.constant 1 : index
    %c0_56 = arith.constant 0 : index
    %c0_57 = arith.constant 0 : index
    %c0_58 = arith.constant 0 : index
    %112 = vector.load %arg2[%c1_55, %c0_56, %c0_57, %c0_58] : memref<2x1x2x128xi32, #tpu.memory_space<vmem>>, vector<1x1x2x128xi32>
    %113 = vector.shape_cast %112 : vector<1x1x2x128xi32> to vector<2x128xi32>
    %c1_59 = arith.constant 1 : index
    %c0_60 = arith.constant 0 : index
    %c0_61 = arith.constant 0 : index
    %c0_62 = arith.constant 0 : index
    %114 = vector.load %arg1[%c1_59, %c0_60, %c0_61, %c0_62] : memref<2x4x2x128xf32, #tpu.memory_space<vmem>>, vector<1x1x2x128xf32>
    %115 = vector.shape_cast %114 : vector<1x1x2x128xf32> to vector<2x128xf32>
    %c1_63 = arith.constant 1 : index
    %c1_64 = arith.constant 1 : index
    %c0_65 = arith.constant 0 : index
    %c0_66 = arith.constant 0 : index
    %116 = vector.load %arg1[%c1_63, %c1_64, %c0_65, %c0_66] : memref<2x4x2x128xf32, #tpu.memory_space<vmem>>, vector<1x1x2x128xf32>
    %117 = vector.shape_cast %116 : vector<1x1x2x128xf32> to vector<2x128xf32>
    %118 = arith.maximumf %115, %117 : vector<2x128xf32>
    %c1_67 = arith.constant 1 : index
    %c2_68 = arith.constant 2 : index
    %c0_69 = arith.constant 0 : index
    %c0_70 = arith.constant 0 : index
    %119 = vector.load %arg1[%c1_67, %c2_68, %c0_69, %c0_70] : memref<2x4x2x128xf32, #tpu.memory_space<vmem>>, vector<1x1x2x128xf32>
    %120 = vector.shape_cast %119 : vector<1x1x2x128xf32> to vector<2x128xf32>
    %121 = arith.maximumf %118, %120 : vector<2x128xf32>
    %c1_71 = arith.constant 1 : index
    %c3_72 = arith.constant 3 : index
    %c0_73 = arith.constant 0 : index
    %c0_74 = arith.constant 0 : index
    %122 = vector.load %arg1[%c1_71, %c3_72, %c0_73, %c0_74] : memref<2x4x2x128xf32, #tpu.memory_space<vmem>>, vector<1x1x2x128xf32>
    %123 = vector.shape_cast %122 : vector<1x1x2x128xf32> to vector<2x128xf32>
    %124 = arith.maximumf %121, %123 : vector<2x128xf32>
    %c1_75 = arith.constant 1 : index
    %c0_76 = arith.constant 0 : index
    %c0_77 = arith.constant 0 : index
    %c0_78 = arith.constant 0 : index
    %125 = vector.load %arg1[%c1_75, %c0_76, %c0_77, %c0_78] : memref<2x4x2x128xf32, #tpu.memory_space<vmem>>, vector<1x1x2x128xf32>
    %126 = vector.shape_cast %125 : vector<1x1x2x128xf32> to vector<2x128xf32>
    %127 = arith.subf %126, %124 : vector<2x128xf32>
    %128 = math.exp %127 : vector<2x128xf32>
    %c0_i32_79 = arith.constant 0 : i32
    %129 = vector.broadcast %c0_i32_79 : i32 to vector<2x128xi32>
    %130 = arith.cmpi eq, %113, %129 : vector<2x128xi32>
    %cst_80 = arith.constant 0.000000e+00 : f32
    %131 = vector.broadcast %cst_80 : f32 to vector<2x128xf32>
    %132 = arith.select %130, %126, %131 : vector<2x128xi1>, vector<2x128xf32>
    %c1_81 = arith.constant 1 : index
    %c1_82 = arith.constant 1 : index
    %c0_83 = arith.constant 0 : index
    %c0_84 = arith.constant 0 : index
    %133 = vector.load %arg1[%c1_81, %c1_82, %c0_83, %c0_84] : memref<2x4x2x128xf32, #tpu.memory_space<vmem>>, vector<1x1x2x128xf32>
    %134 = vector.shape_cast %133 : vector<1x1x2x128xf32> to vector<2x128xf32>
    %135 = arith.subf %134, %124 : vector<2x128xf32>
    %136 = math.exp %135 : vector<2x128xf32>
    %137 = arith.addf %128, %136 : vector<2x128xf32>
    %c1_i32_85 = arith.constant 1 : i32
    %138 = vector.broadcast %c1_i32_85 : i32 to vector<2x128xi32>
    %139 = arith.cmpi eq, %113, %138 : vector<2x128xi32>
    %cst_86 = arith.constant 0.000000e+00 : f32
    %140 = vector.broadcast %cst_86 : f32 to vector<2x128xf32>
    %141 = arith.select %139, %134, %140 : vector<2x128xi1>, vector<2x128xf32>
    %142 = arith.addf %132, %141 : vector<2x128xf32>
    %c1_87 = arith.constant 1 : index
    %c2_88 = arith.constant 2 : index
    %c0_89 = arith.constant 0 : index
    %c0_90 = arith.constant 0 : index
    %143 = vector.load %arg1[%c1_87, %c2_88, %c0_89, %c0_90] : memref<2x4x2x128xf32, #tpu.memory_space<vmem>>, vector<1x1x2x128xf32>
    %144 = vector.shape_cast %143 : vector<1x1x2x128xf32> to vector<2x128xf32>
    %145 = arith.subf %144, %124 : vector<2x128xf32>
    %146 = math.exp %145 : vector<2x128xf32>
    %147 = arith.addf %137, %146 : vector<2x128xf32>
    %c2_i32_91 = arith.constant 2 : i32
    %148 = vector.broadcast %c2_i32_91 : i32 to vector<2x128xi32>
    %149 = arith.cmpi eq, %113, %148 : vector<2x128xi32>
    %cst_92 = arith.constant 0.000000e+00 : f32
    %150 = vector.broadcast %cst_92 : f32 to vector<2x128xf32>
    %151 = arith.select %149, %144, %150 : vector<2x128xi1>, vector<2x128xf32>
    %152 = arith.addf %142, %151 : vector<2x128xf32>
    %c1_93 = arith.constant 1 : index
    %c3_94 = arith.constant 3 : index
    %c0_95 = arith.constant 0 : index
    %c0_96 = arith.constant 0 : index
    %153 = vector.load %arg1[%c1_93, %c3_94, %c0_95, %c0_96] : memref<2x4x2x128xf32, #tpu.memory_space<vmem>>, vector<1x1x2x128xf32>
    %154 = vector.shape_cast %153 : vector<1x1x2x128xf32> to vector<2x128xf32>
    %155 = arith.subf %154, %124 : vector<2x128xf32>
    %156 = math.exp %155 : vector<2x128xf32>
    %157 = arith.addf %147, %156 : vector<2x128xf32>
    %c3_i32_97 = arith.constant 3 : i32
    %158 = vector.broadcast %c3_i32_97 : i32 to vector<2x128xi32>
    %159 = arith.cmpi eq, %113, %158 : vector<2x128xi32>
    %cst_98 = arith.constant 0.000000e+00 : f32
    %160 = vector.broadcast %cst_98 : f32 to vector<2x128xf32>
    %161 = arith.select %159, %154, %160 : vector<2x128xi1>, vector<2x128xf32>
    %162 = arith.addf %152, %161 : vector<2x128xf32>
    %163 = math.log %157 : vector<2x128xf32>
    %164 = arith.subf %124, %162 : vector<2x128xf32>
    %165 = arith.addf %164, %163 : vector<2x128xf32>
    %166 = arith.subf %134, %124 : vector<2x128xf32>
    %167 = arith.subf %166, %163 : vector<2x128xf32>
    %168 = math.exp %167 : vector<2x128xf32>
    %c1_i32_99 = arith.constant 1 : i32
    %169 = vector.broadcast %c1_i32_99 : i32 to vector<2x128xi32>
    %170 = arith.cmpi eq, %113, %169 : vector<2x128xi32>
    %171 = arith.extui %170 : vector<2x128xi1> to vector<2x128xi32>
    %172 = arith.sitofp %171 : vector<2x128xi32> to vector<2x128xf32>
    %173 = vector.shape_cast %165 : vector<2x128xf32> to vector<1x2x128xf32>
    %cst_100 = arith.constant dense<0.000000e+00> : vector<1xf32>
    %174 = vector.multi_reduction <add>, %173, %cst_100 [1, 2] : vector<1x2x128xf32> to vector<1xf32>
    %175 = vector.shape_cast %174 : vector<1xf32> to vector<1x1x1xf32>
    %176 = vector.extract %175[0, 0, 0] : f32 from vector<1x1x1xf32>
    %177 = arith.addf %107, %176 : f32
    %c2_101 = arith.constant 2 : index
    %c0_102 = arith.constant 0 : index
    %178 = vector.load %arg4[%c2_101, %c0_102] : memref<8x128xf32, #tpu.memory_space<vmem>>, vector<2x128xf32>
    tpu.vector_store %arg4[%c2_101, %c0_102], %172 {strides = array<i32>} : memref<8x128xf32, #tpu.memory_space<vmem>>, vector<2x128xf32>,
    %c6 = arith.constant 6 : index
    %c0_103 = arith.constant 0 : index
    %179 = vector.load %arg4[%c6, %c0_103] : memref<8x128xf32, #tpu.memory_space<vmem>>, vector<2x128xf32>
    tpu.vector_store %arg4[%c6, %c0_103], %168 {strides = array<i32>} : memref<8x128xf32, #tpu.memory_space<vmem>>, vector<2x128xf32>,
    %c2_104 = arith.constant 2 : index
    %c0_105 = arith.constant 0 : index
    %180 = vector.load %arg5[%c2_104, %c0_105] : memref<8x128xf32, #tpu.memory_space<vmem>>, vector<2x128xf32>
    tpu.vector_store %arg5[%c2_104, %c0_105], %165 {strides = array<i32>} : memref<8x128xf32, #tpu.memory_space<vmem>>, vector<2x128xf32>,
    %c6_106 = arith.constant 6 : index
    %c0_107 = arith.constant 0 : index
    %181 = vector.load %arg5[%c6_106, %c0_107] : memref<8x128xf32, #tpu.memory_space<vmem>>, vector<2x128xf32>
    tpu.vector_store %arg5[%c6_106, %c0_107], %165 {strides = array<i32>} : memref<8x128xf32, #tpu.memory_space<vmem>>, vector<2x128xf32>,
    %c0_108 = arith.constant 0 : index
    %c0_109 = arith.constant 0 : index
    %182 = vector.load %arg4[%c0_108, %c0_109] : memref<8x128xf32, #tpu.memory_space<vmem>>, vector<8x128xf32>
    %c16_i32_110 = arith.constant 16 : i32
    %183 = tpu.dynamic_rotate %182 by %c16_i32_110 dim 1 : vector<8x128xf32>, i32 -> vector<8x128xf32>
    %c1_i32_111 = arith.constant 1 : i32
    %184 = tpu.dynamic_rotate %183 by %c1_i32_111 dim 0 : vector<8x128xf32>, i32 -> vector<8x128xf32>
    %185 = arith.select %33, %184, %183 : vector<8x128xi1>, vector<8x128xf32>
    %cst_112 = arith.constant 0x7F800000 : f32
    %186 = vector.broadcast %cst_112 : f32 to vector<8x128xf32>
    %187 = arith.select %38, %185, %186 : vector<8x128xi1>, vector<8x128xf32>
    %188 = arith.minimumf %187, %182 : vector<8x128xf32>
    %c112_i32_113 = arith.constant 112 : i32
    %189 = tpu.dynamic_rotate %182 by %c112_i32_113 dim 1 : vector<8x128xf32>, i32 -> vector<8x128xf32>
    %c7_i32_114 = arith.constant 7 : i32
    %190 = tpu.dynamic_rotate %189 by %c7_i32_114 dim 0 : vector<8x128xf32>, i32 -> vector<8x128xf32>
    %191 = arith.select %35, %190, %189 : vector<8x128xi1>, vector<8x128xf32>
    %cst_115 = arith.constant 0x7F800000 : f32
    %192 = vector.broadcast %cst_115 : f32 to vector<8x128xf32>
    %193 = arith.select %41, %191, %192 : vector<8x128xi1>, vector<8x128xf32>
    %194 = arith.minimumf %188, %193 : vector<8x128xf32>
    %c1_i32_116 = arith.constant 1 : i32
    %195 = tpu.dynamic_rotate %182 by %c1_i32_116 dim 1 : vector<8x128xf32>, i32 -> vector<8x128xf32>
    %cst_117 = arith.constant 0x7F800000 : f32
    %196 = vector.broadcast %cst_117 : f32 to vector<8x128xf32>
    %197 = arith.select %29, %195, %196 : vector<8x128xi1>, vector<8x128xf32>
    %198 = arith.minimumf %197, %182 : vector<8x128xf32>
    %c127_i32 = arith.constant 127 : i32
    %199 = tpu.dynamic_rotate %182 by %c127_i32 dim 1 : vector<8x128xf32>, i32 -> vector<8x128xf32>
    %cst_118 = arith.constant 0x7F800000 : f32
    %200 = vector.broadcast %cst_118 : f32 to vector<8x128xf32>
    %201 = arith.select %31, %199, %200 : vector<8x128xi1>, vector<8x128xf32>
    %202 = arith.minimumf %198, %201 : vector<8x128xf32>
    %203 = arith.minimumf %194, %202 : vector<8x128xf32>
    %c16_i32_119 = arith.constant 16 : i32
    %204 = tpu.dynamic_rotate %203 by %c16_i32_119 dim 1 : vector<8x128xf32>, i32 -> vector<8x128xf32>
    %c1_i32_120 = arith.constant 1 : i32
    %205 = tpu.dynamic_rotate %204 by %c1_i32_120 dim 0 : vector<8x128xf32>, i32 -> vector<8x128xf32>
    %206 = arith.select %33, %205, %204 : vector<8x128xi1>, vector<8x128xf32>
    %cst_121 = arith.constant 0xFF800000 : f32
    %207 = vector.broadcast %cst_121 : f32 to vector<8x128xf32>
    %208 = arith.select %38, %206, %207 : vector<8x128xi1>, vector<8x128xf32>
    %209 = arith.maximumf %208, %203 : vector<8x128xf32>
    %c112_i32_122 = arith.constant 112 : i32
    %210 = tpu.dynamic_rotate %203 by %c112_i32_122 dim 1 : vector<8x128xf32>, i32 -> vector<8x128xf32>
    %c7_i32_123 = arith.constant 7 : i32
    %211 = tpu.dynamic_rotate %210 by %c7_i32_123 dim 0 : vector<8x128xf32>, i32 -> vector<8x128xf32>
    %212 = arith.select %35, %211, %210 : vector<8x128xi1>, vector<8x128xf32>
    %cst_124 = arith.constant 0xFF800000 : f32
    %213 = vector.broadcast %cst_124 : f32 to vector<8x128xf32>
    %214 = arith.select %41, %212, %213 : vector<8x128xi1>, vector<8x128xf32>
    %215 = arith.maximumf %209, %214 : vector<8x128xf32>
    %c1_i32_125 = arith.constant 1 : i32
    %216 = tpu.dynamic_rotate %215 by %c1_i32_125 dim 1 : vector<8x128xf32>, i32 -> vector<8x128xf32>
    %cst_126 = arith.constant 0xFF800000 : f32
    %217 = vector.broadcast %cst_126 : f32 to vector<8x128xf32>
    %218 = arith.select %29, %216, %217 : vector<8x128xi1>, vector<8x128xf32>
    %219 = arith.maximumf %218, %215 : vector<8x128xf32>
    %c127_i32_127 = arith.constant 127 : i32
    %220 = tpu.dynamic_rotate %215 by %c127_i32_127 dim 1 : vector<8x128xf32>, i32 -> vector<8x128xf32>
    %cst_128 = arith.constant 0xFF800000 : f32
    %221 = vector.broadcast %cst_128 : f32 to vector<8x128xf32>
    %222 = arith.select %31, %220, %221 : vector<8x128xi1>, vector<8x128xf32>
    %223 = arith.maximumf %219, %222 : vector<8x128xf32>
    %224 = arith.subf %182, %223 : vector<8x128xf32>
    %cst_129 = arith.constant 0.000000e+00 : f32
    %225 = vector.broadcast %cst_129 : f32 to vector<8x128xf32>
    %226 = arith.maximumf %224, %225 : vector<8x128xf32>
    %c16_i32_130 = arith.constant 16 : i32
    %227 = tpu.dynamic_rotate %203 by %c16_i32_130 dim 1 : vector<8x128xf32>, i32 -> vector<8x128xf32>
    %c1_i32_131 = arith.constant 1 : i32
    %228 = tpu.dynamic_rotate %227 by %c1_i32_131 dim 0 : vector<8x128xf32>, i32 -> vector<8x128xf32>
    %229 = arith.select %33, %228, %227 : vector<8x128xi1>, vector<8x128xf32>
    %cst_132 = arith.constant 0x7F800000 : f32
    %230 = vector.broadcast %cst_132 : f32 to vector<8x128xf32>
    %231 = arith.select %38, %229, %230 : vector<8x128xi1>, vector<8x128xf32>
    %232 = arith.minimumf %231, %203 : vector<8x128xf32>
    %c112_i32_133 = arith.constant 112 : i32
    %233 = tpu.dynamic_rotate %203 by %c112_i32_133 dim 1 : vector<8x128xf32>, i32 -> vector<8x128xf32>
    %c7_i32_134 = arith.constant 7 : i32
    %234 = tpu.dynamic_rotate %233 by %c7_i32_134 dim 0 : vector<8x128xf32>, i32 -> vector<8x128xf32>
    %235 = arith.select %35, %234, %233 : vector<8x128xi1>, vector<8x128xf32>
    %cst_135 = arith.constant 0x7F800000 : f32
    %236 = vector.broadcast %cst_135 : f32 to vector<8x128xf32>
    %237 = arith.select %41, %235, %236 : vector<8x128xi1>, vector<8x128xf32>
    %238 = arith.minimumf %232, %237 : vector<8x128xf32>
    %c1_i32_136 = arith.constant 1 : i32
    %239 = tpu.dynamic_rotate %203 by %c1_i32_136 dim 1 : vector<8x128xf32>, i32 -> vector<8x128xf32>
    %cst_137 = arith.constant 0x7F800000 : f32
    %240 = vector.broadcast %cst_137 : f32 to vector<8x128xf32>
    %241 = arith.select %29, %239, %240 : vector<8x128xi1>, vector<8x128xf32>
    %242 = arith.minimumf %241, %203 : vector<8x128xf32>
    %c127_i32_138 = arith.constant 127 : i32
    %243 = tpu.dynamic_rotate %203 by %c127_i32_138 dim 1 : vector<8x128xf32>, i32 -> vector<8x128xf32>
    %cst_139 = arith.constant 0x7F800000 : f32
    %244 = vector.broadcast %cst_139 : f32 to vector<8x128xf32>
    %245 = arith.select %31, %243, %244 : vector<8x128xi1>, vector<8x128xf32>
    %246 = arith.minimumf %242, %245 : vector<8x128xf32>
    %247 = arith.minimumf %238, %246 : vector<8x128xf32>
    %c16_i32_140 = arith.constant 16 : i32
    %248 = tpu.dynamic_rotate %247 by %c16_i32_140 dim 1 : vector<8x128xf32>, i32 -> vector<8x128xf32>
    %c1_i32_141 = arith.constant 1 : i32
    %249 = tpu.dynamic_rotate %248 by %c1_i32_141 dim 0 : vector<8x128xf32>, i32 -> vector<8x128xf32>
    %250 = arith.select %33, %249, %248 : vector<8x128xi1>, vector<8x128xf32>
    %cst_142 = arith.constant 0xFF800000 : f32
    %251 = vector.broadcast %cst_142 : f32 to vector<8x128xf32>
    %252 = arith.select %38, %250, %251 : vector<8x128xi1>, vector<8x128xf32>
    %253 = arith.maximumf %252, %247 : vector<8x128xf32>
    %c112_i32_143 = arith.constant 112 : i32
    %254 = tpu.dynamic_rotate %247 by %c112_i32_143 dim 1 : vector<8x128xf32>, i32 -> vector<8x128xf32>
    %c7_i32_144 = arith.constant 7 : i32
    %255 = tpu.dynamic_rotate %254 by %c7_i32_144 dim 0 : vector<8x128xf32>, i32 -> vector<8x128xf32>
    %256 = arith.select %35, %255, %254 : vector<8x128xi1>, vector<8x128xf32>
    %cst_145 = arith.constant 0xFF800000 : f32
    %257 = vector.broadcast %cst_145 : f32 to vector<8x128xf32>
    %258 = arith.select %41, %256, %257 : vector<8x128xi1>, vector<8x128xf32>
    %259 = arith.maximumf %253, %258 : vector<8x128xf32>
    %c1_i32_146 = arith.constant 1 : i32
    %260 = tpu.dynamic_rotate %259 by %c1_i32_146 dim 1 : vector<8x128xf32>, i32 -> vector<8x128xf32>
    %cst_147 = arith.constant 0xFF800000 : f32
    %261 = vector.broadcast %cst_147 : f32 to vector<8x128xf32>
    %262 = arith.select %29, %260, %261 : vector<8x128xi1>, vector<8x128xf32>
    %263 = arith.maximumf %262, %259 : vector<8x128xf32>
    %c127_i32_148 = arith.constant 127 : i32
    %264 = tpu.dynamic_rotate %259 by %c127_i32_148 dim 1 : vector<8x128xf32>, i32 -> vector<8x128xf32>
    %cst_149 = arith.constant 0xFF800000 : f32
    %265 = vector.broadcast %cst_149 : f32 to vector<8x128xf32>
    %266 = arith.select %31, %264, %265 : vector<8x128xi1>, vector<8x128xf32>
    %267 = arith.maximumf %263, %266 : vector<8x128xf32>
    %268 = arith.subf %203, %267 : vector<8x128xf32>
    %cst_150 = arith.constant 0.000000e+00 : f32
    %269 = vector.broadcast %cst_150 : f32 to vector<8x128xf32>
    %270 = arith.maximumf %268, %269 : vector<8x128xf32>
    %271 = arith.mulf %226, %270 : vector<8x128xf32>
    %272 = arith.subf %270, %271 : vector<8x128xf32>
    %cst_151 = arith.constant 0.000000e+00 : f32
    %273 = vector.broadcast %cst_151 : f32 to vector<8x128xf32>
    %274 = arith.maximumf %272, %273 : vector<8x128xf32>
    %275 = arith.addf %226, %274 : vector<8x128xf32>
    %c16_i32_152 = arith.constant 16 : i32
    %276 = tpu.dynamic_rotate %247 by %c16_i32_152 dim 1 : vector<8x128xf32>, i32 -> vector<8x128xf32>
    %c1_i32_153 = arith.constant 1 : i32
    %277 = tpu.dynamic_rotate %276 by %c1_i32_153 dim 0 : vector<8x128xf32>, i32 -> vector<8x128xf32>
    %278 = arith.select %33, %277, %276 : vector<8x128xi1>, vector<8x128xf32>
    %cst_154 = arith.constant 0x7F800000 : f32
    %279 = vector.broadcast %cst_154 : f32 to vector<8x128xf32>
    %280 = arith.select %38, %278, %279 : vector<8x128xi1>, vector<8x128xf32>
    %281 = arith.minimumf %280, %247 : vector<8x128xf32>
    %c112_i32_155 = arith.constant 112 : i32
    %282 = tpu.dynamic_rotate %247 by %c112_i32_155 dim 1 : vector<8x128xf32>, i32 -> vector<8x128xf32>
    %c7_i32_156 = arith.constant 7 : i32
    %283 = tpu.dynamic_rotate %282 by %c7_i32_156 dim 0 : vector<8x128xf32>, i32 -> vector<8x128xf32>
    %284 = arith.select %35, %283, %282 : vector<8x128xi1>, vector<8x128xf32>
    %cst_157 = arith.constant 0x7F800000 : f32
    %285 = vector.broadcast %cst_157 : f32 to vector<8x128xf32>
    %286 = arith.select %41, %284, %285 : vector<8x128xi1>, vector<8x128xf32>
    %287 = arith.minimumf %281, %286 : vector<8x128xf32>
    %c1_i32_158 = arith.constant 1 : i32
    %288 = tpu.dynamic_rotate %247 by %c1_i32_158 dim 1 : vector<8x128xf32>, i32 -> vector<8x128xf32>
    %cst_159 = arith.constant 0x7F800000 : f32
    %289 = vector.broadcast %cst_159 : f32 to vector<8x128xf32>
    %290 = arith.select %29, %288, %289 : vector<8x128xi1>, vector<8x128xf32>
    %291 = arith.minimumf %290, %247 : vector<8x128xf32>
    %c127_i32_160 = arith.constant 127 : i32
    %292 = tpu.dynamic_rotate %247 by %c127_i32_160 dim 1 : vector<8x128xf32>, i32 -> vector<8x128xf32>
    %cst_161 = arith.constant 0x7F800000 : f32
    %293 = vector.broadcast %cst_161 : f32 to vector<8x128xf32>
    %294 = arith.select %31, %292, %293 : vector<8x128xi1>, vector<8x128xf32>
    %295 = arith.minimumf %291, %294 : vector<8x128xf32>
    %296 = arith.minimumf %287, %295 : vector<8x128xf32>
    %c16_i32_162 = arith.constant 16 : i32
    %297 = tpu.dynamic_rotate %296 by %c16_i32_162 dim 1 : vector<8x128xf32>, i32 -> vector<8x128xf32>
    %c1_i32_163 = arith.constant 1 : i32
    %298 = tpu.dynamic_rotate %297 by %c1_i32_163 dim 0 : vector<8x128xf32>, i32 -> vector<8x128xf32>
    %299 = arith.select %33, %298, %297 : vector<8x128xi1>, vector<8x128xf32>
    %cst_164 = arith.constant 0xFF800000 : f32
    %300 = vector.broadcast %cst_164 : f32 to vector<8x128xf32>
    %301 = arith.select %38, %299, %300 : vector<8x128xi1>, vector<8x128xf32>
    %302 = arith.maximumf %301, %296 : vector<8x128xf32>
    %c112_i32_165 = arith.constant 112 : i32
    %303 = tpu.dynamic_rotate %296 by %c112_i32_165 dim 1 : vector<8x128xf32>, i32 -> vector<8x128xf32>
    %c7_i32_166 = arith.constant 7 : i32
    %304 = tpu.dynamic_rotate %303 by %c7_i32_166 dim 0 : vector<8x128xf32>, i32 -> vector<8x128xf32>
    %305 = arith.select %35, %304, %303 : vector<8x128xi1>, vector<8x128xf32>
    %cst_167 = arith.constant 0xFF800000 : f32
    %306 = vector.broadcast %cst_167 : f32 to vector<8x128xf32>
    %307 = arith.select %41, %305, %306 : vector<8x128xi1>, vector<8x128xf32>
    %308 = arith.maximumf %302, %307 : vector<8x128xf32>
    %c1_i32_168 = arith.constant 1 : i32
    %309 = tpu.dynamic_rotate %308 by %c1_i32_168 dim 1 : vector<8x128xf32>, i32 -> vector<8x128xf32>
    %cst_169 = arith.constant 0xFF800000 : f32
    %310 = vector.broadcast %cst_169 : f32 to vector<8x128xf32>
    %311 = arith.select %29, %309, %310 : vector<8x128xi1>, vector<8x128xf32>
    %312 = arith.maximumf %311, %308 : vector<8x128xf32>
    %c127_i32_170 = arith.constant 127 : i32
    %313 = tpu.dynamic_rotate %308 by %c127_i32_170 dim 1 : vector<8x128xf32>, i32 -> vector<8x128xf32>
    %cst_171 = arith.constant 0xFF800000 : f32
    %314 = vector.broadcast %cst_171 : f32 to vector<8x128xf32>
    %315 = arith.select %31, %313, %314 : vector<8x128xi1>, vector<8x128xf32>
    %316 = arith.maximumf %312, %315 : vector<8x128xf32>
    %317 = arith.subf %247, %316 : vector<8x128xf32>
    %cst_172 = arith.constant 0.000000e+00 : f32
    %318 = vector.broadcast %cst_172 : f32 to vector<8x128xf32>
    %319 = arith.maximumf %317, %318 : vector<8x128xf32>
    %320 = arith.mulf %275, %319 : vector<8x128xf32>
    %321 = arith.subf %319, %320 : vector<8x128xf32>
    %cst_173 = arith.constant 0.000000e+00 : f32
    %322 = vector.broadcast %cst_173 : f32 to vector<8x128xf32>
    %323 = arith.maximumf %321, %322 : vector<8x128xf32>
    %324 = arith.addf %275, %323 : vector<8x128xf32>
    %c16_i32_174 = arith.constant 16 : i32
    %325 = tpu.dynamic_rotate %296 by %c16_i32_174 dim 1 : vector<8x128xf32>, i32 -> vector<8x128xf32>
    %c1_i32_175 = arith.constant 1 : i32
    %326 = tpu.dynamic_rotate %325 by %c1_i32_175 dim 0 : vector<8x128xf32>, i32 -> vector<8x128xf32>
    %327 = arith.select %33, %326, %325 : vector<8x128xi1>, vector<8x128xf32>
    %cst_176 = arith.constant 0x7F800000 : f32
    %328 = vector.broadcast %cst_176 : f32 to vector<8x128xf32>
    %329 = arith.select %38, %327, %328 : vector<8x128xi1>, vector<8x128xf32>
    %330 = arith.minimumf %329, %296 : vector<8x128xf32>
    %c112_i32_177 = arith.constant 112 : i32
    %331 = tpu.dynamic_rotate %296 by %c112_i32_177 dim 1 : vector<8x128xf32>, i32 -> vector<8x128xf32>
    %c7_i32_178 = arith.constant 7 : i32
    %332 = tpu.dynamic_rotate %331 by %c7_i32_178 dim 0 : vector<8x128xf32>, i32 -> vector<8x128xf32>
    %333 = arith.select %35, %332, %331 : vector<8x128xi1>, vector<8x128xf32>
    %cst_179 = arith.constant 0x7F800000 : f32
    %334 = vector.broadcast %cst_179 : f32 to vector<8x128xf32>
    %335 = arith.select %41, %333, %334 : vector<8x128xi1>, vector<8x128xf32>
    %336 = arith.minimumf %330, %335 : vector<8x128xf32>
    %c1_i32_180 = arith.constant 1 : i32
    %337 = tpu.dynamic_rotate %296 by %c1_i32_180 dim 1 : vector<8x128xf32>, i32 -> vector<8x128xf32>
    %cst_181 = arith.constant 0x7F800000 : f32
    %338 = vector.broadcast %cst_181 : f32 to vector<8x128xf32>
    %339 = arith.select %29, %337, %338 : vector<8x128xi1>, vector<8x128xf32>
    %340 = arith.minimumf %339, %296 : vector<8x128xf32>
    %c127_i32_182 = arith.constant 127 : i32
    %341 = tpu.dynamic_rotate %296 by %c127_i32_182 dim 1 : vector<8x128xf32>, i32 -> vector<8x128xf32>
    %cst_183 = arith.constant 0x7F800000 : f32
    %342 = vector.broadcast %cst_183 : f32 to vector<8x128xf32>
    %343 = arith.select %31, %341, %342 : vector<8x128xi1>, vector<8x128xf32>
    %344 = arith.minimumf %340, %343 : vector<8x128xf32>
    %345 = arith.minimumf %336, %344 : vector<8x128xf32>
    %c16_i32_184 = arith.constant 16 : i32
    %346 = tpu.dynamic_rotate %345 by %c16_i32_184 dim 1 : vector<8x128xf32>, i32 -> vector<8x128xf32>
    %c1_i32_185 = arith.constant 1 : i32
    %347 = tpu.dynamic_rotate %346 by %c1_i32_185 dim 0 : vector<8x128xf32>, i32 -> vector<8x128xf32>
    %348 = arith.select %33, %347, %346 : vector<8x128xi1>, vector<8x128xf32>
    %cst_186 = arith.constant 0xFF800000 : f32
    %349 = vector.broadcast %cst_186 : f32 to vector<8x128xf32>
    %350 = arith.select %38, %348, %349 : vector<8x128xi1>, vector<8x128xf32>
    %351 = arith.maximumf %350, %345 : vector<8x128xf32>
    %c112_i32_187 = arith.constant 112 : i32
    %352 = tpu.dynamic_rotate %345 by %c112_i32_187 dim 1 : vector<8x128xf32>, i32 -> vector<8x128xf32>
    %c7_i32_188 = arith.constant 7 : i32
    %353 = tpu.dynamic_rotate %352 by %c7_i32_188 dim 0 : vector<8x128xf32>, i32 -> vector<8x128xf32>
    %354 = arith.select %35, %353, %352 : vector<8x128xi1>, vector<8x128xf32>
    %cst_189 = arith.constant 0xFF800000 : f32
    %355 = vector.broadcast %cst_189 : f32 to vector<8x128xf32>
    %356 = arith.select %41, %354, %355 : vector<8x128xi1>, vector<8x128xf32>
    %357 = arith.maximumf %351, %356 : vector<8x128xf32>
    %c1_i32_190 = arith.constant 1 : i32
    %358 = tpu.dynamic_rotate %357 by %c1_i32_190 dim 1 : vector<8x128xf32>, i32 -> vector<8x128xf32>
    %cst_191 = arith.constant 0xFF800000 : f32
    %359 = vector.broadcast %cst_191 : f32 to vector<8x128xf32>
    %360 = arith.select %29, %358, %359 : vector<8x128xi1>, vector<8x128xf32>
    %361 = arith.maximumf %360, %357 : vector<8x128xf32>
    %c127_i32_192 = arith.constant 127 : i32
    %362 = tpu.dynamic_rotate %357 by %c127_i32_192 dim 1 : vector<8x128xf32>, i32 -> vector<8x128xf32>
    %cst_193 = arith.constant 0xFF800000 : f32
    %363 = vector.broadcast %cst_193 : f32 to vector<8x128xf32>
    %364 = arith.select %31, %362, %363 : vector<8x128xi1>, vector<8x128xf32>
    %365 = arith.maximumf %361, %364 : vector<8x128xf32>
    %366 = arith.subf %296, %365 : vector<8x128xf32>
    %cst_194 = arith.constant 0.000000e+00 : f32
    %367 = vector.broadcast %cst_194 : f32 to vector<8x128xf32>
    %368 = arith.maximumf %366, %367 : vector<8x128xf32>
    %369 = arith.mulf %324, %368 : vector<8x128xf32>
    %370 = arith.subf %368, %369 : vector<8x128xf32>
    %cst_195 = arith.constant 0.000000e+00 : f32
    %371 = vector.broadcast %cst_195 : f32 to vector<8x128xf32>
    %372 = arith.maximumf %370, %371 : vector<8x128xf32>
    %373 = arith.addf %324, %372 : vector<8x128xf32>
    %c0_196 = arith.constant 0 : index
    %c0_197 = arith.constant 0 : index
    %374 = vector.load %arg5[%c0_196, %c0_197] : memref<8x128xf32, #tpu.memory_space<vmem>>, vector<8x128xf32>
    %375 = arith.mulf %374, %373 : vector<8x128xf32>
    %376 = vector.shape_cast %375 : vector<8x128xf32> to vector<1x8x128xf32>
    %cst_198 = arith.constant dense<0.000000e+00> : vector<1xf32>
    %377 = vector.multi_reduction <add>, %376, %cst_198 [1, 2] : vector<1x8x128xf32> to vector<1xf32>
    %378 = vector.shape_cast %377 : vector<1xf32> to vector<1x1x1xf32>
    %379 = vector.extract %378[0, 0, 0] : f32 from vector<1x1x1xf32>
    %380 = tpu.iota {dimensions = array<i32: 1>} : vector<8x128xi32>
    %c0_i32_199 = arith.constant 0 : i32
    %381 = vector.broadcast %c0_i32_199 : i32 to vector<8x128xi32>
    %382 = arith.cmpi eq, %380, %381 : vector<8x128xi32>
    %383 = vector.broadcast %177 : f32 to vector<8x128xf32>
    %384 = vector.broadcast %379 : f32 to vector<8x128xf32>
    %385 = arith.select %382, %383, %384 : vector<8x128xi1>, vector<8x128xf32>
    %c0_200 = arith.constant 0 : index
    %c0_201 = arith.constant 0 : index
    %c0_202 = arith.constant 0 : index
    %386 = vector.load %arg3[%c0_200, %c0_201, %c0_202] : memref<1x8x128xf32, #tpu.memory_space<vmem>>, vector<1x8x128xf32>
    %387 = vector.shape_cast %386 : vector<1x8x128xf32> to vector<8x128xf32>
    %388 = vector.shape_cast %385 : vector<8x128xf32> to vector<1x8x128xf32>
    tpu.vector_store %arg3[%c0_200, %c0_201, %c0_202], %388 {strides = array<i32>} : memref<1x8x128xf32, #tpu.memory_space<vmem>>, vector<1x8x128xf32>,
    return
  }
  func.func @transform_0(%arg0: i32) -> (i32, i32, i32, i32) {
    %c0_i32 = arith.constant 0 : i32
    %c0_i32_0 = arith.constant 0 : i32
    %c0_i32_1 = arith.constant 0 : i32
    %c0_i32_2 = arith.constant 0 : i32
    return %arg0, %c0_i32, %c0_i32_0, %c0_i32_1 : i32, i32, i32, i32
  }
  func.func @transform_1(%arg0: i32) -> (i32, i32, i32, i32) {
    %c0_i32 = arith.constant 0 : i32
    %c0_i32_0 = arith.constant 0 : i32
    %c0_i32_1 = arith.constant 0 : i32
    %c0_i32_2 = arith.constant 0 : i32
    return %arg0, %c0_i32, %c0_i32_0, %c0_i32_1 : i32, i32, i32, i32
  }
  func.func @transform_2(%arg0: i32) -> (i32, i32, i32) {
    %c0_i32 = arith.constant 0 : i32
    %c0_i32_0 = arith.constant 0 : i32
    %c0_i32_1 = arith.constant 0 : i32
    return %arg0, %c0_i32, %c0_i32_0 : i32, i32, i32
  }
}

</mosaic_0001>

<llo_original>
// kernel: tpu_custom_call.1
$region0: #{tpu_custom_call.1}
  #allocation0 [shape = 'u32[]', space=smem, size = 0x4, offset = 0x4, fixed_abs, tag = 'smem constant byte address 0x4 - core index']
  #allocation1 [shape = 'u32[144,128]{1,0:T(1,128)}', space=vmem, size = 0x12000, scoped, tag = 'internal scratch']
  #allocation2 [shape = 'f32[8,128]{1,0:T(8,128)}', space=vmem, size = 0x1000, scoped, tag = 'scratch operand']
  #allocation3 [shape = 'f32[8,128]{1,0:T(8,128)}', space=vmem, size = 0x1000, scoped, tag = 'scratch operand']
  %s0 = inlined_call_operand.hbm [shape: f32[2,4,2,128], index: 0, kind: input, shape index: {}]
  %s1 = inlined_call_operand.hbm [shape: s32[2,1,2,128], index: 1, kind: input, shape index: {}]
  %s2 = inlined_call_operand.hbm [shape: f32[1,8,128], index: 2, kind: output, shape index: {}]
  %s3 = sld [smem:[#allocation0]]
  $region26: #{tpu_custom_call.1} parent=0
    _
  %s5 = ssub.s32 1, %s3
  %s6 = scalar_select 0, %s5, %s3
  $region1: #{tpu_custom_call.1} parent=0
    #allocation4 [shape = 'u8[8192]{0}', space=vmem, size = 0x2000, scoped, tag = 'input window, operand 0, single buffered']
    #allocation5 [shape = 's32[1]{0}', space=sflag, size = 0x4, scoped, tag = 'scoped memory for tpu_custom_call.1']
    #allocation6 [shape = 's32[1]{0}', space=sflag, size = 0x4, scoped, tag = 'scoped memory for tpu_custom_call.1']
    #allocation7 [shape = 'u8[2048]{0}', space=vmem, size = 0x800, scoped, tag = 'input window, operand 1, single buffered']
    #allocation8 [shape = 's32[1]{0}', space=sflag, size = 0x4, scoped, tag = 'scoped memory for tpu_custom_call.1']
    #allocation9 [shape = 'u8[4096]{0}', space=vmem, size = 0x1000, scoped, tag = 'output window, operand 0, single buffered']
    %7 = vsyncpa [#allocation5], 0
    %8 = vsyncpa [#allocation8], 0
    %9 = vsyncpa [#allocation6], 0
    // Predicated region
    $region2: #{tpu_custom_call.1} parent=1 // pred_check
      _
    $region3: #{tpu_custom_call.1} parent=1 // pred_check_branch
      %11 = sbr.rel (0) target = $region5
    $region4: #{tpu_custom_call.1} parent=1 // pred_region
      %s13 = ssub.s32 256, 256
      %14 = vsyncadd [#allocation5], %s13
      %s15 = sshll.u32 [#allocation4], 4
      %s16 = int_to_ptr.vmem [resolvable:$true] %s15
      %21 = dma.hbm_to_vmem [thread:$0]  %s0, 256, %s16, [#allocation5], 32, 32, 2
    $region5: #{tpu_custom_call.1} parent=1 // pred_fallthru
      _
    // Predicated region
    $region6: #{tpu_custom_call.1} parent=1 // pred_check
      _
    $region7: #{tpu_custom_call.1} parent=1 // pred_check_branch
      %23 = sbr.rel (0) target = $region9
    $region8: #{tpu_custom_call.1} parent=1 // pred_region
      %s25 = ssub.s32 64, 64
      %26 = vsyncadd [#allocation8], %s25
      %s27 = sshll.u32 [#allocation7], 4
      %s28 = int_to_ptr.vmem [resolvable:$true] %s27
      %33 = dma.hbm_to_vmem [thread:$0]  %s1, 64, %s28, [#allocation8], 32, 32, 2
    $region9: #{tpu_custom_call.1} parent=1 // pred_fallthru
      _
    // Predicated region
    $region10: #{tpu_custom_call.1} parent=1 // pred_check
      _
    $region11: #{tpu_custom_call.1} parent=1 // pred_check_branch
      %35 = sbr.rel (0) target = $region13
    $region12: #{tpu_custom_call.1} parent=1 // pred_region
      %36 = dma.done [#allocation5], 256
    $region13: #{tpu_custom_call.1} parent=1 // pred_fallthru
      _
    // Predicated region
    $region14: #{tpu_custom_call.1} parent=1 // pred_check
      _
    $region15: #{tpu_custom_call.1} parent=1 // pred_check_branch
      %38 = sbr.rel (0) target = $region17
    $region16: #{tpu_custom_call.1} parent=1 // pred_region
      %39 = dma.done [#allocation8], 64
    $region17: #{tpu_custom_call.1} parent=1 // pred_fallthru
      _
    %v40 = vlaneseq
    %v41 = vand.u32 %v40, 127
    %v42 = vlaneseq
    %v43 = vshrl.u32 %v42, 7
    %vm44 = vcmp.eq.s32.totalorder %v43, 0
    %vm45 = vcmp.eq.s32.totalorder %v43, 1
    %vm46 = vcmp.eq.s32.totalorder %v43, 2
    %vm47 = vmor %vm44, %vm46
    %vm48 = vcmp.eq.s32.totalorder %v43, 3
    %vm49 = vmor %vm45, %vm48
    %vm50 = vcmp.eq.s32.totalorder %v43, 4
    %vm51 = vmor %vm47, %vm50
    %vm52 = vcmp.eq.s32.totalorder %v43, 5
    %vm53 = vmor %vm49, %vm52
    %vm54 = vcmp.eq.s32.totalorder %v43, 6
    %vm55 = vmor %vm51, %vm54
    %vm56 = vcmp.eq.s32.totalorder %v43, 7
    %vm57 = vmor %vm53, %vm56
    %vm58 = vmxor %vm55, 1
    %vm59 = vmxor %vm57, 1
    %v60 = vand.u32 %v41, 15
    %vm61 = vcmp.ge.s32.totalorder %v60, 1
    %vm62 = vcmp.lt.s32.totalorder %v60, 15
    %vm63 = vcmp.lt.s32.totalorder %v41, 16
    %vm64 = vcmp.ge.s32.totalorder %v41, 112
    %vm65 = vcmp.ge.s32.totalorder %v41, 16
    %vm66 = vmor %vm58, %vm65
    %vm67 = vcmp.lt.s32.totalorder %v41, 112
    %vm68 = vmor %vm59, %vm67
    %v69 = vld [vmem:[#allocation7] sm:$0x3]
    %v70 = vld [vmem:[#allocation4] sm:$0x3]
    %s71 = scalar_lea.vmem [#allocation4], 2
    %v72 = vld [vmem:[%s71] sm:$0x3]
    %v73 = vmax.f32 %v70, %v72
    %s74 = scalar_lea.vmem [#allocation4], 4
    %v75 = vld [vmem:[%s74] sm:$0x3]
    %v76 = vmax.f32 %v73, %v75
    %s77 = scalar_lea.vmem [#allocation4], 6
    %v78 = vld [vmem:[%s77] sm:$0x3]
    %v79 = vmax.f32 %v76, %v78
    %v80 = vsub.f32 %v70, %v79
    %v81 = vmul.f32 %v80, 1.442695
    %v82 = vpow.pop %v81
    %vm83 = vcmp.eq.s32.totalorder %v69, 0
    %v84 = vsel %vm83, %v70, 0.0
    %v85 = vsub.f32 %v72, %v79
    %v86 = vmul.f32 %v85, 1.442695
    %v87 = vpow.pop %v86
    %v88 = vadd.f32 %v82, %v87
    %vm89 = vcmp.eq.s32.totalorder %v69, 1
    %v90 = vsel %vm89, %v72, 0.0
    %v91 = vadd.f32 %v84, %v90
    %v92 = vsub.f32 %v75, %v79
    %v93 = vmul.f32 %v92, 1.442695
    %v94 = vpow.pop %v93
    %v95 = vadd.f32 %v88, %v94
    %vm96 = vcmp.eq.s32.totalorder %v69, 2
    %v97 = vsel %vm96, %v75, 0.0
    %v98 = vadd.f32 %v91, %v97
    %v99 = vsub.f32 %v78, %v79
    %v100 = vmul.f32 %v99, 1.442695
    %v101 = vpow.pop %v100
    %v102 = vadd.f32 %v95, %v101
    %vm103 = vcmp.eq.s32.totalorder %v69, 3
    %v104 = vsel %vm103, %v78, 0.0
    %v105 = vadd.f32 %v98, %v104
    %v106 = vlog2.pop %v102
    %v107 = vmul.f32 %v106, 0.6931472
    %v108 = vsub.f32 %v79, %v105
    %v109 = vadd.f32 %v108, %v107
    %v110 = vsub.f32 %v85, %v107
    %v111 = vmul.f32 %v110, 1.442695
    %v112 = vpow.pop %v111
    %v113 = vsel %vm89, 1, 0
    %v114 = vcvt.s32.f32 %v113
    %vm115 = vcmask 1041408
    %v116 = vsel %vm115, %v109, 0.0
    %117 = vadd.xlane.f32.xlu0 %v116
    %v118 = vpop.xlane.xlu0 %117
    %v119 = vrot.slane %v118, 4
    %v120 = vadd.f32 %v118, %v119
    %v121 = vrot.slane %v120, 2
    %v122 = vadd.f32 %v120, %v121
    %v123 = vrot.slane %v122, 1
    %v124 = vadd.f32 %v122, %v123
    %s125 = vtos %v124
    %s126 = sadd.f32 %s125, 0.0
    %127 = vst [vmem:[#allocation2] sm:$0x3] %v114
    %128 = vst [vmem:[#allocation2 + $0x4] sm:$0x3] %v112
    %129 = vst [vmem:[#allocation3] sm:$0x3] %v109
    %130 = vst [vmem:[#allocation3 + $0x4] sm:$0x3] %v109
    %s131 = scalar_lea.vmem [#allocation7], 2
    %v132 = vld [vmem:[%s131] sm:$0x3]
    %s133 = scalar_lea.vmem [#allocation4], 8
    %v134 = vld [vmem:[%s133] sm:$0x3]
    %s135 = scalar_lea.vmem [#allocation4], 10
    %v136 = vld [vmem:[%s135] sm:$0x3]
    %v137 = vmax.f32 %v134, %v136
    %s138 = scalar_lea.vmem [#allocation4], 12
    %v139 = vld [vmem:[%s138] sm:$0x3]
    %v140 = vmax.f32 %v137, %v139
    %s141 = scalar_lea.vmem [#allocation4], 14
    %v142 = vld [vmem:[%s141] sm:$0x3]
    %v143 = vmax.f32 %v140, %v142
    %v144 = vsub.f32 %v134, %v143
    %v145 = vmul.f32 %v144, 1.442695
    %v146 = vpow.pop %v145
    %vm147 = vcmp.eq.s32.totalorder %v132, 0
    %v148 = vsel %vm147, %v134, 0.0
    %v149 = vsub.f32 %v136, %v143
    %v150 = vmul.f32 %v149, 1.442695
    %v151 = vpow.pop %v150
    %v152 = vadd.f32 %v146, %v151
    %vm153 = vcmp.eq.s32.totalorder %v132, 1
    %v154 = vsel %vm153, %v136, 0.0
    %v155 = vadd.f32 %v148, %v154
    %v156 = vsub.f32 %v139, %v143
    %v157 = vmul.f32 %v156, 1.442695
    %v158 = vpow.pop %v157
    %v159 = vadd.f32 %v152, %v158
    %vm160 = vcmp.eq.s32.totalorder %v132, 2
    %v161 = vsel %vm160, %v139, 0.0
    %v162 = vadd.f32 %v155, %v161
    %v163 = vsub.f32 %v142, %v143
    %v164 = vmul.f32 %v163, 1.442695
    %v165 = vpow.pop %v164
    %v166 = vadd.f32 %v159, %v165
    %vm167 = vcmp.eq.s32.totalorder %v132, 3
    %v168 = vsel %vm167, %v142, 0.0
    %v169 = vadd.f32 %v162, %v168
    %v170 = vlog2.pop %v166
    %v171 = vmul.f32 %v170, 0.6931472
    %v172 = vsub.f32 %v143, %v169
    %v173 = vadd.f32 %v172, %v171
    %v174 = vsub.f32 %v149, %v171
    %v175 = vmul.f32 %v174, 1.442695
    %v176 = vpow.pop %v175
    %v177 = vsel %vm153, 1, 0
    %v178 = vcvt.s32.f32 %v177
    %v179 = vsel %vm115, %v173, 0.0
    %180 = vadd.xlane.f32.xlu0 %v179
    %v181 = vpop.xlane.xlu0 %180
    %v182 = vrot.slane %v181, 4
    %v183 = vadd.f32 %v181, %v182
    %v184 = vrot.slane %v183, 2
    %v185 = vadd.f32 %v183, %v184
    %v186 = vrot.slane %v185, 1
    %v187 = vadd.f32 %v185, %v186
    %s188 = vtos %v187
    %s189 = sadd.f32 %s126, %s188
    %190 = vst [vmem:[#allocation2 + $0x2] sm:$0x3] %v178
    %191 = vst [vmem:[#allocation2 + $0x6] sm:$0x3] %v176
    %192 = vst [vmem:[#allocation3 + $0x2] sm:$0x3] %v173
    %193 = vst [vmem:[#allocation3 + $0x6] sm:$0x3] %v173
    %v194 = vld [vmem:[#allocation2] sm:$0xff]
    %195 = vrot.lane.b32.xlu0 %v194, 16
    %v196 = vpop.permute.xlu0 %195
    %v197 = vrot.slane %v196, 7
    %v198 = vsel %vm63, %v197, %v196
    %v199 = vsel %vm66, %v198, inf
    %v200 = vmin.f32 %v199, %v194
    %201 = vrot.lane.b32.xlu0 %v194, 112
    %v202 = vpop.permute.xlu0 %201
    %v203 = vrot.slane %v202, 1
    %v204 = vsel %vm64, %v203, %v202
    %v205 = vsel %vm68, %v204, inf
    %v206 = vmin.f32 %v200, %v205
    %207 = vrot.lane.b32.xlu0 %v194, 1
    %v208 = vpop.permute.xlu0 %207
    %v209 = vsel %vm61, %v208, inf
    %v210 = vmin.f32 %v209, %v194
    %211 = vrot.lane.b32.xlu0 %v194, 127
    %v212 = vpop.permute.xlu0 %211
    %v213 = vsel %vm62, %v212, inf
    %v214 = vmin.f32 %v210, %v213
    %v215 = vmin.f32 %v206, %v214
    %216 = vrot.lane.b32.xlu0 %v215, 16
    %v217 = vpop.permute.xlu0 %216
    %v218 = vrot.slane %v217, 7
    %v219 = vsel %vm63, %v218, %v217
    %v220 = vsel %vm66, %v219, -inf
    %v221 = vmax.f32 %v220, %v215
    %222 = vrot.lane.b32.xlu0 %v215, 112
    %v223 = vpop.permute.xlu0 %222
    %v224 = vrot.slane %v223, 1
    %v225 = vsel %vm64, %v224, %v223
    %v226 = vsel %vm68, %v225, -inf
    %v227 = vmax.f32 %v221, %v226
    %228 = vrot.lane.b32.xlu0 %v227, 1
    %v229 = vpop.permute.xlu0 %228
    %v230 = vsel %vm61, %v229, -inf
    %v231 = vmax.f32 %v230, %v227
    %232 = vrot.lane.b32.xlu0 %v227, 127
    %v233 = vpop.permute.xlu0 %232
    %v234 = vsel %vm62, %v233, -inf
    %v235 = vmax.f32 %v231, %v234
    %v236 = vsub.f32 %v194, %v235
    %v237 = vmax.f32 %v236, 0.0
    %v238 = vsel %vm66, %v219, inf
    %v239 = vmin.f32 %v238, %v215
    %v240 = vsel %vm68, %v225, inf
    %v241 = vmin.f32 %v239, %v240
    %242 = vrot.lane.b32.xlu0 %v215, 1
    %v243 = vpop.permute.xlu0 %242
    %v244 = vsel %vm61, %v243, inf
    %v245 = vmin.f32 %v244, %v215
    %246 = vrot.lane.b32.xlu0 %v215, 127
    %v247 = vpop.permute.xlu0 %246
    %v248 = vsel %vm62, %v247, inf
    %v249 = vmin.f32 %v245, %v248
    %v250 = vmin.f32 %v241, %v249
    %251 = vrot.lane.b32.xlu0 %v250, 16
    %v252 = vpop.permute.xlu0 %251
    %v253 = vrot.slane %v252, 7
    %v254 = vsel %vm63, %v253, %v252
    %v255 = vsel %vm66, %v254, -inf
    %v256 = vmax.f32 %v255, %v250
    %257 = vrot.lane.b32.xlu0 %v250, 112
    %v258 = vpop.permute.xlu0 %257
    %v259 = vrot.slane %v258, 1
    %v260 = vsel %vm64, %v259, %v258
    %v261 = vsel %vm68, %v260, -inf
    %v262 = vmax.f32 %v256, %v261
    %263 = vrot.lane.b32.xlu0 %v262, 1
    %v264 = vpop.permute.xlu0 %263
    %v265 = vsel %vm61, %v264, -inf
    %v266 = vmax.f32 %v265, %v262
    %267 = vrot.lane.b32.xlu0 %v262, 127
    %v268 = vpop.permute.xlu0 %267
    %v269 = vsel %vm62, %v268, -inf
    %v270 = vmax.f32 %v266, %v269
    %v271 = vsub.f32 %v215, %v270
    %v272 = vmax.f32 %v271, 0.0
    %v273 = vmul.f32 %v237, %v272
    %v274 = vsub.f32 %v272, %v273
    %v275 = vmax.f32 %v274, 0.0
    %v276 = vadd.f32 %v237, %v275
    %v277 = vsel %vm66, %v254, inf
    %v278 = vmin.f32 %v277, %v250
    %v279 = vsel %vm68, %v260, inf
    %v280 = vmin.f32 %v278, %v279
    %281 = vrot.lane.b32.xlu0 %v250, 1
    %v282 = vpop.permute.xlu0 %281
    %v283 = vsel %vm61, %v282, inf
    %v284 = vmin.f32 %v283, %v250
    %285 = vrot.lane.b32.xlu0 %v250, 127
    %v286 = vpop.permute.xlu0 %285
    %v287 = vsel %vm62, %v286, inf
    %v288 = vmin.f32 %v284, %v287
    %v289 = vmin.f32 %v280, %v288
    %290 = vrot.lane.b32.xlu0 %v289, 16
    %v291 = vpop.permute.xlu0 %290
    %v292 = vrot.slane %v291, 7
    %v293 = vsel %vm63, %v292, %v291
    %v294 = vsel %vm66, %v293, -inf
    %v295 = vmax.f32 %v294, %v289
    %296 = vrot.lane.b32.xlu0 %v289, 112
    %v297 = vpop.permute.xlu0 %296
    %v298 = vrot.slane %v297, 1
    %v299 = vsel %vm64, %v298, %v297
    %v300 = vsel %vm68, %v299, -inf
    %v301 = vmax.f32 %v295, %v300
    %302 = vrot.lane.b32.xlu0 %v301, 1
    %v303 = vpop.permute.xlu0 %302
    %v304 = vsel %vm61, %v303, -inf
    %v305 = vmax.f32 %v304, %v301
    %306 = vrot.lane.b32.xlu0 %v301, 127
    %v307 = vpop.permute.xlu0 %306
    %v308 = vsel %vm62, %v307, -inf
    %v309 = vmax.f32 %v305, %v308
    %v310 = vsub.f32 %v250, %v309
    %v311 = vmax.f32 %v310, 0.0
    %v312 = vmul.f32 %v276, %v311
    %v313 = vsub.f32 %v311, %v312
    %v314 = vmax.f32 %v313, 0.0
    %v315 = vadd.f32 %v276, %v314
    %v316 = vsel %vm66, %v293, inf
    %v317 = vmin.f32 %v316, %v289
    %v318 = vsel %vm68, %v299, inf
    %v319 = vmin.f32 %v317, %v318
    %320 = vrot.lane.b32.xlu0 %v289, 1
    %v321 = vpop.permute.xlu0 %320
    %v322 = vsel %vm61, %v321, inf
    %v323 = vmin.f32 %v322, %v289
    %324 = vrot.lane.b32.xlu0 %v289, 127
    %v325 = vpop.permute.xlu0 %324
    %v326 = vsel %vm62, %v325, inf
    %v327 = vmin.f32 %v323, %v326
    %v328 = vmin.f32 %v319, %v327
    %329 = vrot.lane.b32.xlu0 %v328, 16
    %v330 = vpop.permute.xlu0 %329
    %v331 = vrot.slane %v330, 7
    %v332 = vsel %vm63, %v331, %v330
    %v333 = vsel %vm66, %v332, -inf
    %v334 = vmax.f32 %v333, %v328
    %335 = vrot.lane.b32.xlu0 %v328, 112
    %v336 = vpop.permute.xlu0 %335
    %v337 = vrot.slane %v336, 1
    %v338 = vsel %vm64, %v337, %v336
    %v339 = vsel %vm68, %v338, -inf
    %v340 = vmax.f32 %v334, %v339
    %341 = vrot.lane.b32.xlu0 %v340, 1
    %v342 = vpop.permute.xlu0 %341
    %v343 = vsel %vm61, %v342, -inf
    %v344 = vmax.f32 %v343, %v340
    %345 = vrot.lane.b32.xlu0 %v340, 127
    %v346 = vpop.permute.xlu0 %345
    %v347 = vsel %vm62, %v346, -inf
    %v348 = vmax.f32 %v344, %v347
    %v349 = vsub.f32 %v289, %v348
    %v350 = vmax.f32 %v349, 0.0
    %v351 = vmul.f32 %v315, %v350
    %v352 = vsub.f32 %v350, %v351
    %v353 = vmax.f32 %v352, 0.0
    %v354 = vadd.f32 %v315, %v353
    %v355 = vld [vmem:[#allocation3] sm:$0xff]
    %v356 = vmul.f32 %v355, %v354
    %357 = vadd.xlane.f32.xlu0 %v356
    %v358 = vpop.xlane.xlu0 %357
    %v359 = vrot.slane %v358, 4
    %v360 = vadd.f32 %v358, %v359
    %v361 = vrot.slane %v360, 2
    %v362 = vadd.f32 %v360, %v361
    %v363 = vrot.slane %v362, 1
    %v364 = vadd.f32 %v362, %v363
    %s365 = vtos %v364
    %vm366 = vcmp.eq.s32.totalorder %v41, 0
    %v367 = vstv %s189
    %v368 = vstv %s365
    %v369 = vsel %vm366, %v367, %v368
    %370 = vst [vmem:[#allocation9] sm:$0xff] %v369
    // Predicated region
    $region18: #{tpu_custom_call.1} parent=1 // pred_check
      _
    $region19: #{tpu_custom_call.1} parent=1 // pred_check_branch
      %372 = sbr.rel (0) target = $region21
    $region20: #{tpu_custom_call.1} parent=1 // pred_region
      %s374 = ssub.s32 128, 128
      %375 = vsyncadd [#allocation6], %s374
      %s377 = sshll.u32 [#allocation9], 4
      %s378 = int_to_ptr.vmem [resolvable:$true] %s377
      %380 = dma.vmem_to_hbm [thread:$0]  %s378, 128, %s2, [#allocation6]
    $region21: #{tpu_custom_call.1} parent=1 // pred_fallthru
      _
    // Predicated region
    $region22: #{tpu_custom_call.1} parent=1 // pred_check
      _
    $region23: #{tpu_custom_call.1} parent=1 // pred_check_branch
      %382 = sbr.rel (0) target = $region25
    $region24: #{tpu_custom_call.1} parent=1 // pred_region
      %383 = dma.done [#allocation6], 128
    $region25: #{tpu_custom_call.1} parent=1 // pred_fallthru
      _
    %384 = vsyncpa [#allocation5], 1
    %385 = vsyncpa [#allocation8], 1
    %386 = vsyncpa [#allocation6], 1

</llo_original>
